<compile_context>
chip_gen: v5e
topology: v5e:2x2
jax: 0.10.0
libtpu: 0.0.40
codegen_flags: <defaults>
</compile_context>

<pallas_src>
import functools

import jax
import jax.numpy as jnp
from jax.experimental import pallas as pl
from jax.experimental.pallas import tpu as pltpu

_HIGHEST = jax.lax.Precision.HIGHEST


def _fm_kernel(x_ref, w0_ref, wcat_ref, u_ref, s_ref, o_ref):
    """Fused FM forward on a (tm, F) tile of the input.

    x_ref   : (tm, F)    input tile in VMEM
    w0_ref  : (1, 1)     global bias                          (resident)
    wcat_ref: (F, D+1)   [w2 | w1]                            (resident)
    u_ref   : (D+1, 1)   [0.5]*D ++ [0]  reduction weights    (resident)
    s_ref   : (F, 1)     0.5 * rowsum(w2^2)                   (resident)
    o_ref   : (tm, 1)    output tile
    """
    x = x_ref[...]
    d1 = wcat_ref.shape[1]            # D + 1 (static)

    # One MXU matmul gives both the latent projection (cols 0..D-1) and x @ w1
    # (col D).  f32 operands kept exact on the MXU (cancellation below).
    xw = jnp.dot(x, wcat_ref[...], precision=_HIGHEST,
                 preferred_element_type=jnp.float32)               # (tm, D+1)

    # Row reductions done on the MXU (idle otherwise), not VPU/XLU:
    #   r_sq  = 0.5 * sum_j (x@w2)_j^2       (u zeroes out the w1 column)
    #   r_x2  = 0.5 * sum_j ((x^2)@(w2^2))_j (j-sum folded into s in the wrapper)
    r_sq = jnp.dot(xw * xw, u_ref[...], precision=_HIGHEST,
                   preferred_element_type=jnp.float32)              # (tm, 1)
    r_x2 = jnp.dot(x * x, s_ref[...], precision=_HIGHEST,
                   preferred_element_type=jnp.float32)              # (tm, 1)

    first = xw[:, d1 - 1:d1] + w0_ref[...]                          # (tm, 1)
    o_ref[...] = (first + (r_sq - r_x2)).astype(o_ref.dtype)


def _round_up(n, m):
    return ((n + m - 1) // m) * m


@functools.partial(jax.jit, static_argnames=("tm",))
def fm_forward(x, w0, w1, w2, *, tm=8192):
    """FM forward pass, fused into a single Pallas TPU kernel.

    x : (M, F) float32
    w0: (1,)   float32   global bias          (PyTorch: torch.zeros([1]))
    w1: (F, 1) float32   first-order weights  (PyTorch layout)
    w2: (F, D) float32   latent factors
    returns (M, 1) float32
    """
    M, F = x.shape
    F2, D = w2.shape
    assert F == F2 and w1.shape == (F, 1) and w0.shape == (1,)

    # ---- one-time layout / weight prep (tiny, outside the hot loop) ----------
    w0_2d = w0.reshape(1, 1)
    wcat = jnp.concatenate([w2, w1], axis=1)                              # (F, D+1)
    u = jnp.concatenate([jnp.full((D, 1), 0.5, jnp.float32),
                         jnp.zeros((1, 1), jnp.float32)], axis=0)         # (D+1, 1)
    s = 0.5 * jnp.sum(w2 * w2, axis=1, keepdims=True)                     # (F, 1)

    # ---- batch tiling: no padding copy of x, ragged tail handled by slicing --
    if M <= tm:
        tm_eff = max(_round_up(M, 8), 8)
        num_blocks = 1
    else:
        num_blocks = pl.cdiv(M, tm)
        tm_eff = _round_up(pl.cdiv(M, num_blocks), 128)
        num_blocks = pl.cdiv(M, tm_eff)
    # Feed both v7x TensorCores once the batch is big enough to matter.
    if num_blocks == 1 and M >= 4096:
        tm_eff = _round_up(pl.cdiv(M, 2), 128)
        num_blocks = pl.cdiv(M, tm_eff)

    rows_out = num_blocks * tm_eff

    # ---- explicit VMEM budget (x tile + (tm,1) out tile lane-pad to 128 lanes,
    #      both double-buffered) + headroom; safe on v5e/v6e (128 MiB) and v7x (64 MiB)
    lane_pad_bytes = tm_eff * 128 * 4
    vmem_needed = 2 * (lane_pad_bytes + lane_pad_bytes) + (4 << 20)
    vmem_limit = int(min(max(vmem_needed, 32 << 20), 48 << 20))

    out = pl.pallas_call(
        _fm_kernel,
        out_shape=jax.ShapeDtypeStruct((rows_out, 1), x.dtype),
        grid_spec=pltpu.PrefetchScalarGridSpec(
            num_scalar_prefetch=0,
            grid=(num_blocks,),
            in_specs=[
                pl.BlockSpec((tm_eff, F), lambda i: (i, 0)),    # input tile
                pl.BlockSpec((1, 1), lambda i: (0, 0)),         # w0      (resident)
                pl.BlockSpec((F, D + 1), lambda i: (0, 0)),     # [w2|w1] (resident)
                pl.BlockSpec((D + 1, 1), lambda i: (0, 0)),     # u       (resident)
                pl.BlockSpec((F, 1), lambda i: (0, 0)),         # s       (resident)
            ],
            out_specs=pl.BlockSpec((tm_eff, 1), lambda i: (i, 0)),
        ),
        compiler_params=pltpu.CompilerParams(
            dimension_semantics=("parallel",),
            vmem_limit_bytes=vmem_limit),
    )(x, w0_2d, wcat, u, s)
    return out[:M]


def fm_reference(x, w0, w1, w2):
    """Plain-JAX reference replicating FM.forward (true-f32 matmuls)."""
    first = w0 + jnp.dot(x, w1, precision=_HIGHEST)
    second = 0.5 * jnp.sum(jnp.dot(x, w2, precision=_HIGHEST) ** 2
                           - jnp.dot(x * x, w2 * w2, precision=_HIGHEST),
                           axis=1, keepdims=True)
    return first + second


def _check(batch, fea_num, latent_dim, key, tm=8192):
    kx, k1, k2 = jax.random.split(key, 3)
    x = jax.random.normal(kx, (batch, fea_num), jnp.float32)
    w0 = jnp.zeros((1,), jnp.float32)                              # torch.zeros([1])
    w1 = jax.random.uniform(k1, (fea_num, 1), jnp.float32)         # torch.rand
    w2 = jax.random.uniform(k2, (fea_num, latent_dim), jnp.float32)

    out = jax.block_until_ready(fm_forward(x, w0, w1, w2, tm=tm))
    ref = fm_reference(x, w0, w1, w2)
    assert out.shape == (batch, 1)
    err = jnp.max(jnp.abs(out - ref))
    assert jnp.allclose(out, ref, atol=2e-3, rtol=1e-4), f"mismatch: max abs err {err}"


if __name__ == "__main__":
    key = jax.random.PRNGKey(0)
    k1, k2, k3 = jax.random.split(key, 3)
    # Small case consistent with the module (batch=8, fea_num=32, latent_dim=8).
    _check(batch=8, fea_num=32, latent_dim=8, key=k1)
    # Non-multiple-of-8 batch: exercises the ragged (garbage-row) tail slicing.
    _check(batch=300, fea_num=32, latent_dim=16, key=k2)
    # Larger batch with a small tm override: exercises the multi-block 'parallel'
    # grid (both v7x TensorCores) and the 128-aligned tile split with ragged tail.
    _check(batch=5000, fea_num=32, latent_dim=8, key=k3, tm=2048)
    print("KERNEL_OK")
</pallas_src>

<mosaic_0001>
module attributes {stable_mosaic.version = 11 : i64} {
  func.func @_fm_kernel(%arg0: i32, %arg1: memref<8x32xf32, #tpu.memory_space<vmem>>, %arg2: memref<1x1xf32, #tpu.memory_space<vmem>>, %arg3: memref<32x9xf32, #tpu.memory_space<vmem>>, %arg4: memref<9x1xf32, #tpu.memory_space<vmem>>, %arg5: memref<32x1xf32, #tpu.memory_space<vmem>>, %arg6: memref<8x1xf32, #tpu.memory_space<vmem>>) attributes {dimension_semantics = [#tpu.dimension_semantics<parallel>], iteration_bounds = array<i64: 1>, scalar_prefetch = 0 : i64, scratch_operands = 0 : i64, tpu.core_type = #tpu.core_type<tc>, window_params = [{transform_indices = @transform_0, window_bounds = array<i64: 8, 32>}, {pipeline_mode = #tpu.pipeline_mode<synchronous>, transform_indices = @transform_1, window_bounds = array<i64: 1, 1>}, {pipeline_mode = #tpu.pipeline_mode<synchronous>, transform_indices = @transform_2, window_bounds = array<i64: 32, 9>}, {pipeline_mode = #tpu.pipeline_mode<synchronous>, transform_indices = @transform_3, window_bounds = array<i64: 9, 1>}, {pipeline_mode = #tpu.pipeline_mode<synchronous>, transform_indices = @transform_4, window_bounds = array<i64: 32, 1>}, {transform_indices = @transform_5, window_bounds = array<i64: 8, 1>}]} {
    %c0 = arith.constant 0 : index
    %c0_0 = arith.constant 0 : index
    %0 = vector.load %arg1[%c0, %c0_0] : memref<8x32xf32, #tpu.memory_space<vmem>>, vector<8x32xf32>
    %c0_1 = arith.constant 0 : index
    %c0_2 = arith.constant 0 : index
    %1 = vector.load %arg3[%c0_1, %c0_2] : memref<32x9xf32, #tpu.memory_space<vmem>>, vector<32x9xf32>
    %cst = arith.constant dense<0.000000e+00> : vector<8x9xf32>
    %2 = tpu.matmul %0, %1, %cst {dimension_numbers = #tpu.dot_dimension_numbers<[1], [0], [0], [1], [0, 0, 1, 1], [], []>, precision = #tpu.contract_precision<fp32>} : vector<8x32xf32>, vector<32x9xf32>, vector<8x9xf32> -> vector<8x9xf32>
    %3 = arith.mulf %2, %2 : vector<8x9xf32>
    %c0_3 = arith.constant 0 : index
    %c0_4 = arith.constant 0 : index
    %4 = vector.load %arg4[%c0_3, %c0_4] : memref<9x1xf32, #tpu.memory_space<vmem>>, vector<9x1xf32>
    %cst_5 = arith.constant dense<0.000000e+00> : vector<8x1xf32>
    %5 = tpu.matmul %3, %4, %cst_5 {dimension_numbers = #tpu.dot_dimension_numbers<[1], [0], [0], [1], [0, 0, 1, 1], [], []>, precision = #tpu.contract_precision<fp32>} : vector<8x9xf32>, vector<9x1xf32>, vector<8x1xf32> -> vector<8x1xf32>
    %6 = arith.mulf %0, %0 : vector<8x32xf32>
    %c0_6 = arith.constant 0 : index
    %c0_7 = arith.constant 0 : index
    %7 = vector.load %arg5[%c0_6, %c0_7] : memref<32x1xf32, #tpu.memory_space<vmem>>, vector<32x1xf32>
    %cst_8 = arith.constant dense<0.000000e+00> : vector<8x1xf32>
    %8 = tpu.matmul %6, %7, %cst_8 {dimension_numbers = #tpu.dot_dimension_numbers<[1], [0], [0], [1], [0, 0, 1, 1], [], []>, precision = #tpu.contract_precision<fp32>} : vector<8x32xf32>, vector<32x1xf32>, vector<8x1xf32> -> vector<8x1xf32>
    %9 = vector.extract_strided_slice %2 {offsets = [0, 8], sizes = [8, 1], strides = [1, 1]} : vector<8x9xf32> to vector<8x1xf32>
    %c0_9 = arith.constant 0 : index
    %c0_10 = arith.constant 0 : index
    %10 = vector.load %arg2[%c0_9, %c0_10] : memref<1x1xf32, #tpu.memory_space<vmem>>, vector<1x1xf32>
    %11 = vector.broadcast %10 : vector<1x1xf32> to vector<8x1xf32>
    %12 = arith.addf %9, %11 : vector<8x1xf32>
    %13 = arith.subf %5, %8 : vector<8x1xf32>
    %14 = arith.addf %12, %13 : vector<8x1xf32>
    %c0_11 = arith.constant 0 : index
    %c0_12 = arith.constant 0 : index
    %15 = vector.load %arg6[%c0_11, %c0_12] : memref<8x1xf32, #tpu.memory_space<vmem>>, vector<8x1xf32>
    tpu.vector_store %arg6[%c0_11, %c0_12], %14 {strides = array<i32>} : memref<8x1xf32, #tpu.memory_space<vmem>>, vector<8x1xf32>,
    return
  }
  func.func @transform_0(%arg0: i32) -> (i32, i32) {
    %c0_i32 = arith.constant 0 : i32
    %c0_i32_0 = arith.constant 0 : i32
    return %arg0, %c0_i32 : i32, i32
  }
  func.func @transform_1(%arg0: i32) -> (i32, i32) {
    %c0_i32 = arith.constant 0 : i32
    %c0_i32_0 = arith.constant 0 : i32
    %c0_i32_1 = arith.constant 0 : i32
    return %c0_i32, %c0_i32_0 : i32, i32
  }
  func.func @transform_2(%arg0: i32) -> (i32, i32) {
    %c0_i32 = arith.constant 0 : i32
    %c0_i32_0 = arith.constant 0 : i32
    %c0_i32_1 = arith.constant 0 : i32
    return %c0_i32, %c0_i32_0 : i32, i32
  }
  func.func @transform_3(%arg0: i32) -> (i32, i32) {
    %c0_i32 = arith.constant 0 : i32
    %c0_i32_0 = arith.constant 0 : i32
    %c0_i32_1 = arith.constant 0 : i32
    return %c0_i32, %c0_i32_0 : i32, i32
  }
  func.func @transform_4(%arg0: i32) -> (i32, i32) {
    %c0_i32 = arith.constant 0 : i32
    %c0_i32_0 = arith.constant 0 : i32
    %c0_i32_1 = arith.constant 0 : i32
    return %c0_i32, %c0_i32_0 : i32, i32
  }
  func.func @transform_5(%arg0: i32) -> (i32, i32) {
    %c0_i32 = arith.constant 0 : i32
    %c0_i32_0 = arith.constant 0 : i32
    return %arg0, %c0_i32 : i32, i32
  }
}

</mosaic_0001>

<llo_original>
// kernel: fm_forward.1
$region0: #{fm_forward.1}
  #allocation0 [shape = 'u32[]', space=smem, size = 0x4, offset = 0x4, fixed_abs, tag = 'smem constant byte address 0x4 - core index']
  #allocation1 [shape = 'u32[72,128]{1,0:T(1,128)}', space=vmem, size = 0x9000, scoped, tag = 'internal scratch']
  #allocation2 [shape = 'f32[1,1]{1,0:T(1,128)S(1)}', space=vmem, size = 0x200, scoped, tag = 'scoped memory for fm_forward.1']
  %s0 = inlined_call_operand.vmem [shape: f32[8,32], index: 0, kind: input, shape index: {}]
  %s1 = inlined_call_operand.<no memory space> [shape: f32[1,1], index: 1, kind: input, shape index: {}]
  %s2 = inlined_call_operand.vmem [shape: f32[32,9], index: 2, kind: input, shape index: {}]
  %s3 = inlined_call_operand.vmem [shape: f32[9,1], index: 3, kind: input, shape index: {}]
  %s4 = inlined_call_operand.vmem [shape: f32[32,1], index: 4, kind: input, shape index: {}]
  %s5 = inlined_call_operand.vmem [shape: f32[8,1], index: 5, kind: output, shape index: {}]
  %s6 = sld [smem:[#allocation0]]
  $region30: #{fm_forward.1} parent=0
    _
  %s8 = ssub.s32 1, %s6
  %s9 = scalar_select 0, %s8, %s6
  %v10 = vstv %s1
  %11 = vst [vmem:[#allocation2] sm:$0x1] %v10
  // Predicated region
  $region2: #{fm_forward.1} parent=0 // pred_check
    _
  $region3: #{fm_forward.1} parent=0 // pred_check_branch
    %13 = sbr.rel (0) target = $region5
  $region4: #{fm_forward.1} parent=0 // pred_region
    _
  $region5: #{fm_forward.1} parent=0 // pred_fallthru
    _
  // Predicated region
  $region6: #{fm_forward.1} parent=0 // pred_check
    _
  $region7: #{fm_forward.1} parent=0 // pred_check_branch
    %15 = sbr.rel (0) target = $region9
  $region8: #{fm_forward.1} parent=0 // pred_region
    _
  $region9: #{fm_forward.1} parent=0 // pred_fallthru
    _
  // Predicated region
  $region10: #{fm_forward.1} parent=0 // pred_check
    _
  $region11: #{fm_forward.1} parent=0 // pred_check_branch
    %17 = sbr.rel (0) target = $region13
  $region12: #{fm_forward.1} parent=0 // pred_region
    _
  $region13: #{fm_forward.1} parent=0 // pred_fallthru
    _
  // Predicated region
  $region14: #{fm_forward.1} parent=0 // pred_check
    _
  $region15: #{fm_forward.1} parent=0 // pred_check_branch
    %19 = sbr.rel (0) target = $region17
  $region16: #{fm_forward.1} parent=0 // pred_region
    _
  $region17: #{fm_forward.1} parent=0 // pred_fallthru
    _
  // Predicated region
  $region18: #{fm_forward.1} parent=0 // pred_check
    _
  $region19: #{fm_forward.1} parent=0 // pred_check_branch
    %21 = sbr.rel (0) target = $region21
  $region20: #{fm_forward.1} parent=0 // pred_region
    _
  $region21: #{fm_forward.1} parent=0 // pred_fallthru
    _
  %v22 = vld [vmem:[%s0] sm:$0xff]
  %v23 = vld [vmem:[%s2] sm:$0xff]
  %v24 = vld [vmem:[%s2 + $0x8] sm:$0xff]
  %v25 = vld [vmem:[%s2 + $0x10] sm:$0xff]
  %v26 = vld [vmem:[%s2 + $0x18] sm:$0xff]
  %vm27 = vcmask 261120
  %v29 = vsel %vm27, %v22, 0
  %31 = vmatpush.msra.mxu0 0.0
  %32 = vmatpush.msra.mxu0 0.0
  %33 = vmatpush.msra.mxu0 0.0
  %34 = vmatpush.msra.mxu0 0.0
  %35 = vmatpush.msra.mxu0 0.0
  %36 = vmatpush.msra.mxu0 0.0
  %37 = vmatpush.msra.mxu0 0.0
  %38 = vmatpush.msra.mxu0 0.0
  %39 = vmatpush.msra.mxu0 0.0
  %40 = vmatpush.msra.mxu0 0.0
  %41 = vmatpush.msra.mxu0 0.0
  %42 = vmatpush.msra.mxu0 0.0
  %v43 = vand.u32 %v26, 4294901760
  %44 = vmatpush.msra.mxu0 %v43
  %v45 = vand.u32 %v25, 4294901760
  %46 = vmatpush.msra.mxu0 %v45
  %v47 = vand.u32 %v24, 4294901760
  %48 = vmatpush.msra.mxu0 %v47
  %v49 = vand.u32 %v23, 4294901760
  %50 = vmatpush.msra.mxu0 %v49
  %v51 = vand.u32 %v29, 4294901760
  %v52 = vsub.f32 %v29, %v51
  %v53 = vand.u32 %v52, 4294901760
  %v54 = vsub.f32 %v52, %v53
  %v55 = vand.u32 %v54, 4294901760
  %56 = vmatmul.f32.gmra.mxu0 %v55
  %v57 = vpop.f32.mrf.mxu0
  %v58 = vadd.f32 0.0, %v57
  %59 = vdwg.mxu0
  %60 = vmatpush.msra.mxu0 0.0
  %61 = vmatpush.msra.mxu0 0.0
  %62 = vmatpush.msra.mxu0 0.0
  %63 = vmatpush.msra.mxu0 0.0
  %64 = vmatpush.msra.mxu0 0.0
  %65 = vmatpush.msra.mxu0 0.0
  %66 = vmatpush.msra.mxu0 0.0
  %67 = vmatpush.msra.mxu0 0.0
  %68 = vmatpush.msra.mxu0 0.0
  %69 = vmatpush.msra.mxu0 0.0
  %70 = vmatpush.msra.mxu0 0.0
  %71 = vmatpush.msra.mxu0 0.0
  %v72 = vand.u32 %v26, 4294901760
  %v73 = vsub.f32 %v26, %v72
  %v74 = vand.u32 %v73, 4294901760
  %v75 = vsub.f32 %v73, %v74
  %v76 = vand.u32 %v75, 4294901760
  %77 = vmatpush.msra.mxu0 %v76
  %v78 = vand.u32 %v25, 4294901760
  %v79 = vsub.f32 %v25, %v78
  %v80 = vand.u32 %v79, 4294901760
  %v81 = vsub.f32 %v79, %v80
  %v82 = vand.u32 %v81, 4294901760
  %83 = vmatpush.msra.mxu0 %v82
  %v84 = vand.u32 %v24, 4294901760
  %v85 = vsub.f32 %v24, %v84
  %v86 = vand.u32 %v85, 4294901760
  %v87 = vsub.f32 %v85, %v86
  %v88 = vand.u32 %v87, 4294901760
  %89 = vmatpush.msra.mxu0 %v88
  %v90 = vand.u32 %v23, 4294901760
  %v91 = vsub.f32 %v23, %v90
  %v92 = vand.u32 %v91, 4294901760
  %v93 = vsub.f32 %v91, %v92
  %v94 = vand.u32 %v93, 4294901760
  %95 = vmatpush.msra.mxu0 %v94
  %v96 = vand.u32 %v29, 4294901760
  %97 = vmatmul.f32.gmra.mxu0 %v96
  %v98 = vpop.f32.mrf.mxu0
  %v99 = vadd.f32 %v58, %v98
  %100 = vdwg.mxu0
  %101 = vmatpush.msra.mxu0 0.0
  %102 = vmatpush.msra.mxu0 0.0
  %103 = vmatpush.msra.mxu0 0.0
  %104 = vmatpush.msra.mxu0 0.0
  %105 = vmatpush.msra.mxu0 0.0
  %106 = vmatpush.msra.mxu0 0.0
  %107 = vmatpush.msra.mxu0 0.0
  %108 = vmatpush.msra.mxu0 0.0
  %109 = vmatpush.msra.mxu0 0.0
  %110 = vmatpush.msra.mxu0 0.0
  %111 = vmatpush.msra.mxu0 0.0
  %112 = vmatpush.msra.mxu0 0.0
  %v113 = vand.u32 %v26, 4294901760
  %v114 = vsub.f32 %v26, %v113
  %115 = vmatpush.msra.mxu0 %v114
  %v116 = vand.u32 %v25, 4294901760
  %v117 = vsub.f32 %v25, %v116
  %118 = vmatpush.msra.mxu0 %v117
  %v119 = vand.u32 %v24, 4294901760
  %v120 = vsub.f32 %v24, %v119
  %121 = vmatpush.msra.mxu0 %v120
  %v122 = vand.u32 %v23, 4294901760
  %v123 = vsub.f32 %v23, %v122
  %124 = vmatpush.msra.mxu0 %v123
  %v125 = vand.u32 %v29, 4294901760
  %v126 = vsub.f32 %v29, %v125
  %127 = vmatmul.f32.gmra.mxu0 %v126
  %v128 = vpop.f32.mrf.mxu0
  %v129 = vadd.f32 %v99, %v128
  %130 = vdwg.mxu0
  %131 = vmatpush.msra.mxu0 0.0
  %132 = vmatpush.msra.mxu0 0.0
  %133 = vmatpush.msra.mxu0 0.0
  %134 = vmatpush.msra.mxu0 0.0
  %135 = vmatpush.msra.mxu0 0.0
  %136 = vmatpush.msra.mxu0 0.0
  %137 = vmatpush.msra.mxu0 0.0
  %138 = vmatpush.msra.mxu0 0.0
  %139 = vmatpush.msra.mxu0 0.0
  %140 = vmatpush.msra.mxu0 0.0
  %141 = vmatpush.msra.mxu0 0.0
  %142 = vmatpush.msra.mxu0 0.0
  %v143 = vand.u32 %v26, 4294901760
  %144 = vmatpush.msra.mxu0 %v143
  %v145 = vand.u32 %v25, 4294901760
  %146 = vmatpush.msra.mxu0 %v145
  %v147 = vand.u32 %v24, 4294901760
  %148 = vmatpush.msra.mxu0 %v147
  %v149 = vand.u32 %v23, 4294901760
  %150 = vmatpush.msra.mxu0 %v149
  %v151 = vand.u32 %v29, 4294901760
  %v152 = vsub.f32 %v29, %v151
  %v153 = vand.u32 %v152, 4294901760
  %154 = vmatmul.f32.gmra.mxu0 %v153
  %v155 = vpop.f32.mrf.mxu0
  %v156 = vadd.f32 %v129, %v155
  %157 = vdwg.mxu0
  %158 = vmatpush.msra.mxu0 0.0
  %159 = vmatpush.msra.mxu0 0.0
  %160 = vmatpush.msra.mxu0 0.0
  %161 = vmatpush.msra.mxu0 0.0
  %162 = vmatpush.msra.mxu0 0.0
  %163 = vmatpush.msra.mxu0 0.0
  %164 = vmatpush.msra.mxu0 0.0
  %165 = vmatpush.msra.mxu0 0.0
  %166 = vmatpush.msra.mxu0 0.0
  %167 = vmatpush.msra.mxu0 0.0
  %168 = vmatpush.msra.mxu0 0.0
  %169 = vmatpush.msra.mxu0 0.0
  %v170 = vand.u32 %v26, 4294901760
  %v171 = vsub.f32 %v26, %v170
  %v172 = vand.u32 %v171, 4294901760
  %173 = vmatpush.msra.mxu0 %v172
  %v174 = vand.u32 %v25, 4294901760
  %v175 = vsub.f32 %v25, %v174
  %v176 = vand.u32 %v175, 4294901760
  %177 = vmatpush.msra.mxu0 %v176
  %v178 = vand.u32 %v24, 4294901760
  %v179 = vsub.f32 %v24, %v178
  %v180 = vand.u32 %v179, 4294901760
  %181 = vmatpush.msra.mxu0 %v180
  %v182 = vand.u32 %v23, 4294901760
  %v183 = vsub.f32 %v23, %v182
  %v184 = vand.u32 %v183, 4294901760
  %185 = vmatpush.msra.mxu0 %v184
  %v186 = vand.u32 %v29, 4294901760
  %187 = vmatmul.f32.gmra.mxu0 %v186
  %v188 = vpop.f32.mrf.mxu0
  %v189 = vadd.f32 %v156, %v188
  %190 = vdwg.mxu0
  %191 = vmatpush.msra.mxu0 0.0
  %192 = vmatpush.msra.mxu0 0.0
  %193 = vmatpush.msra.mxu0 0.0
  %194 = vmatpush.msra.mxu0 0.0
  %195 = vmatpush.msra.mxu0 0.0
  %196 = vmatpush.msra.mxu0 0.0
  %197 = vmatpush.msra.mxu0 0.0
  %198 = vmatpush.msra.mxu0 0.0
  %199 = vmatpush.msra.mxu0 0.0
  %200 = vmatpush.msra.mxu0 0.0
  %201 = vmatpush.msra.mxu0 0.0
  %202 = vmatpush.msra.mxu0 0.0
  %v203 = vand.u32 %v26, 4294901760
  %204 = vmatpush.msra.mxu0 %v203
  %v205 = vand.u32 %v25, 4294901760
  %206 = vmatpush.msra.mxu0 %v205
  %v207 = vand.u32 %v24, 4294901760
  %208 = vmatpush.msra.mxu0 %v207
  %v209 = vand.u32 %v23, 4294901760
  %210 = vmatpush.msra.mxu0 %v209
  %v211 = vand.u32 %v29, 4294901760
  %212 = vmatmul.f32.gmra.mxu0 %v211
  %v213 = vpop.f32.mrf.mxu0
  %v214 = vadd.f32 %v189, %v213
  %215 = vdwg.mxu0
  %v216 = vmul.f32 %v214, %v214
  %v217 = vld [vmem:[%s3] sm:$0xff]
  %v218 = vld [vmem:[%s3 + $0x8] sm:$0x1]
  %vm219 = vcmask 72704
  %v221 = vsel %vm219, %v216, 0
  %vm223 = vcmask 1040384
  %v225 = vsel %vm223, %v218, 0
  %227 = vmatpush.msra.mxu0 0.0
  %228 = vmatpush.msra.mxu0 0.0
  %229 = vmatpush.msra.mxu0 0.0
  %230 = vmatpush.msra.mxu0 0.0
  %231 = vmatpush.msra.mxu0 0.0
  %232 = vmatpush.msra.mxu0 0.0
  %233 = vmatpush.msra.mxu0 0.0
  %234 = vmatpush.msra.mxu0 0.0
  %235 = vmatpush.msra.mxu0 0.0
  %236 = vmatpush.msra.mxu0 0.0
  %237 = vmatpush.msra.mxu0 0.0
  %238 = vmatpush.msra.mxu0 0.0
  %239 = vmatpush.msra.mxu0 0.0
  %240 = vmatpush.msra.mxu0 0.0
  %v241 = vand.u32 %v225, 4294901760
  %242 = vmatpush.msra.mxu0 %v241
  %v243 = vand.u32 %v217, 4294901760
  %244 = vmatpush.msra.mxu0 %v243
  %v245 = vand.u32 %v221, 4294901760
  %v246 = vsub.f32 %v221, %v245
  %v247 = vand.u32 %v246, 4294901760
  %v248 = vsub.f32 %v246, %v247
  %v249 = vand.u32 %v248, 4294901760
  %250 = vmatmul.f32.gmra.mxu0 %v249
  %v251 = vpop.f32.mrf.mxu0
  %v252 = vadd.f32 0.0, %v251
  %253 = vdwg.mxu0
  %254 = vmatpush.msra.mxu0 0.0
  %255 = vmatpush.msra.mxu0 0.0
  %256 = vmatpush.msra.mxu0 0.0
  %257 = vmatpush.msra.mxu0 0.0
  %258 = vmatpush.msra.mxu0 0.0
  %259 = vmatpush.msra.mxu0 0.0
  %260 = vmatpush.msra.mxu0 0.0
  %261 = vmatpush.msra.mxu0 0.0
  %262 = vmatpush.msra.mxu0 0.0
  %263 = vmatpush.msra.mxu0 0.0
  %264 = vmatpush.msra.mxu0 0.0
  %265 = vmatpush.msra.mxu0 0.0
  %266 = vmatpush.msra.mxu0 0.0
  %267 = vmatpush.msra.mxu0 0.0
  %v268 = vand.u32 %v225, 4294901760
  %v269 = vsub.f32 %v225, %v268
  %v270 = vand.u32 %v269, 4294901760
  %v271 = vsub.f32 %v269, %v270
  %v272 = vand.u32 %v271, 4294901760
  %273 = vmatpush.msra.mxu0 %v272
  %v274 = vand.u32 %v217, 4294901760
  %v275 = vsub.f32 %v217, %v274
  %v276 = vand.u32 %v275, 4294901760
  %v277 = vsub.f32 %v275, %v276
  %v278 = vand.u32 %v277, 4294901760
  %279 = vmatpush.msra.mxu0 %v278
  %v280 = vand.u32 %v221, 4294901760
  %281 = vmatmul.f32.gmra.mxu0 %v280
  %v282 = vpop.f32.mrf.mxu0
  %v283 = vadd.f32 %v252, %v282
  %284 = vdwg.mxu0
  %285 = vmatpush.msra.mxu0 0.0
  %286 = vmatpush.msra.mxu0 0.0
  %287 = vmatpush.msra.mxu0 0.0
  %288 = vmatpush.msra.mxu0 0.0
  %289 = vmatpush.msra.mxu0 0.0
  %290 = vmatpush.msra.mxu0 0.0
  %291 = vmatpush.msra.mxu0 0.0
  %292 = vmatpush.msra.mxu0 0.0
  %293 = vmatpush.msra.mxu0 0.0
  %294 = vmatpush.msra.mxu0 0.0
  %295 = vmatpush.msra.mxu0 0.0
  %296 = vmatpush.msra.mxu0 0.0
  %297 = vmatpush.msra.mxu0 0.0
  %298 = vmatpush.msra.mxu0 0.0
  %v299 = vand.u32 %v225, 4294901760
  %v300 = vsub.f32 %v225, %v299
  %301 = vmatpush.msra.mxu0 %v300
  %v302 = vand.u32 %v217, 4294901760
  %v303 = vsub.f32 %v217, %v302
  %304 = vmatpush.msra.mxu0 %v303
  %v305 = vand.u32 %v221, 4294901760
  %v306 = vsub.f32 %v221, %v305
  %307 = vmatmul.f32.gmra.mxu0 %v306
  %v308 = vpop.f32.mrf.mxu0
  %v309 = vadd.f32 %v283, %v308
  %310 = vdwg.mxu0
  %311 = vmatpush.msra.mxu0 0.0
  %312 = vmatpush.msra.mxu0 0.0
  %313 = vmatpush.msra.mxu0 0.0
  %314 = vmatpush.msra.mxu0 0.0
  %315 = vmatpush.msra.mxu0 0.0
  %316 = vmatpush.msra.mxu0 0.0
  %317 = vmatpush.msra.mxu0 0.0
  %318 = vmatpush.msra.mxu0 0.0
  %319 = vmatpush.msra.mxu0 0.0
  %320 = vmatpush.msra.mxu0 0.0
  %321 = vmatpush.msra.mxu0 0.0
  %322 = vmatpush.msra.mxu0 0.0
  %323 = vmatpush.msra.mxu0 0.0
  %324 = vmatpush.msra.mxu0 0.0
  %v325 = vand.u32 %v225, 4294901760
  %326 = vmatpush.msra.mxu0 %v325
  %v327 = vand.u32 %v217, 4294901760
  %328 = vmatpush.msra.mxu0 %v327
  %v329 = vand.u32 %v221, 4294901760
  %v330 = vsub.f32 %v221, %v329
  %v331 = vand.u32 %v330, 4294901760
  %332 = vmatmul.f32.gmra.mxu0 %v331
  %v333 = vpop.f32.mrf.mxu0
  %v334 = vadd.f32 %v309, %v333
  %335 = vdwg.mxu0
  %336 = vmatpush.msra.mxu0 0.0
  %337 = vmatpush.msra.mxu0 0.0
  %338 = vmatpush.msra.mxu0 0.0
  %339 = vmatpush.msra.mxu0 0.0
  %340 = vmatpush.msra.mxu0 0.0
  %341 = vmatpush.msra.mxu0 0.0
  %342 = vmatpush.msra.mxu0 0.0
  %343 = vmatpush.msra.mxu0 0.0
  %344 = vmatpush.msra.mxu0 0.0
  %345 = vmatpush.msra.mxu0 0.0
  %346 = vmatpush.msra.mxu0 0.0
  %347 = vmatpush.msra.mxu0 0.0
  %348 = vmatpush.msra.mxu0 0.0
  %349 = vmatpush.msra.mxu0 0.0
  %v350 = vand.u32 %v225, 4294901760
  %v351 = vsub.f32 %v225, %v350
  %v352 = vand.u32 %v351, 4294901760
  %353 = vmatpush.msra.mxu0 %v352
  %v354 = vand.u32 %v217, 4294901760
  %v355 = vsub.f32 %v217, %v354
  %v356 = vand.u32 %v355, 4294901760
  %357 = vmatpush.msra.mxu0 %v356
  %v358 = vand.u32 %v221, 4294901760
  %359 = vmatmul.f32.gmra.mxu0 %v358
  %v360 = vpop.f32.mrf.mxu0
  %v361 = vadd.f32 %v334, %v360
  %362 = vdwg.mxu0
  %363 = vmatpush.msra.mxu0 0.0
  %364 = vmatpush.msra.mxu0 0.0
  %365 = vmatpush.msra.mxu0 0.0
  %366 = vmatpush.msra.mxu0 0.0
  %367 = vmatpush.msra.mxu0 0.0
  %368 = vmatpush.msra.mxu0 0.0
  %369 = vmatpush.msra.mxu0 0.0
  %370 = vmatpush.msra.mxu0 0.0
  %371 = vmatpush.msra.mxu0 0.0
  %372 = vmatpush.msra.mxu0 0.0
  %373 = vmatpush.msra.mxu0 0.0
  %374 = vmatpush.msra.mxu0 0.0
  %375 = vmatpush.msra.mxu0 0.0
  %376 = vmatpush.msra.mxu0 0.0
  %v377 = vand.u32 %v225, 4294901760
  %378 = vmatpush.msra.mxu0 %v377
  %v379 = vand.u32 %v217, 4294901760
  %380 = vmatpush.msra.mxu0 %v379
  %v381 = vand.u32 %v221, 4294901760
  %382 = vmatmul.f32.gmra.mxu0 %v381
  %v383 = vpop.f32.mrf.mxu0
  %v384 = vadd.f32 %v361, %v383
  %385 = vdwg.mxu0
  %v386 = vmul.f32 %v22, %v22
  %v387 = vld [vmem:[%s4] sm:$0xff]
  %v388 = vld [vmem:[%s4 + $0x8] sm:$0xff]
  %v389 = vld [vmem:[%s4 + $0x10] sm:$0xff]
  %v390 = vld [vmem:[%s4 + $0x18] sm:$0xff]
  %v392 = vsel %vm27, %v386, 0
  %394 = vmatpush.msra.mxu0 0.0
  %395 = vmatpush.msra.mxu0 0.0
  %396 = vmatpush.msra.mxu0 0.0
  %397 = vmatpush.msra.mxu0 0.0
  %398 = vmatpush.msra.mxu0 0.0
  %399 = vmatpush.msra.mxu0 0.0
  %400 = vmatpush.msra.mxu0 0.0
  %401 = vmatpush.msra.mxu0 0.0
  %402 = vmatpush.msra.mxu0 0.0
  %403 = vmatpush.msra.mxu0 0.0
  %404 = vmatpush.msra.mxu0 0.0
  %405 = vmatpush.msra.mxu0 0.0
  %v406 = vand.u32 %v390, 4294901760
  %407 = vmatpush.msra.mxu0 %v406
  %v408 = vand.u32 %v389, 4294901760
  %409 = vmatpush.msra.mxu0 %v408
  %v410 = vand.u32 %v388, 4294901760
  %411 = vmatpush.msra.mxu0 %v410
  %v412 = vand.u32 %v387, 4294901760
  %413 = vmatpush.msra.mxu0 %v412
  %v414 = vand.u32 %v392, 4294901760
  %v415 = vsub.f32 %v392, %v414
  %v416 = vand.u32 %v415, 4294901760
  %v417 = vsub.f32 %v415, %v416
  %v418 = vand.u32 %v417, 4294901760
  %419 = vmatmul.f32.gmra.mxu0 %v418
  %v420 = vpop.f32.mrf.mxu0
  %v421 = vadd.f32 0.0, %v420
  %422 = vdwg.mxu0
  %423 = vmatpush.msra.mxu0 0.0
  %424 = vmatpush.msra.mxu0 0.0
  %425 = vmatpush.msra.mxu0 0.0
  %426 = vmatpush.msra.mxu0 0.0
  %427 = vmatpush.msra.mxu0 0.0
  %428 = vmatpush.msra.mxu0 0.0
  %429 = vmatpush.msra.mxu0 0.0
  %430 = vmatpush.msra.mxu0 0.0
  %431 = vmatpush.msra.mxu0 0.0
  %432 = vmatpush.msra.mxu0 0.0
  %433 = vmatpush.msra.mxu0 0.0
  %434 = vmatpush.msra.mxu0 0.0
  %v435 = vand.u32 %v390, 4294901760
  %v436 = vsub.f32 %v390, %v435
  %v437 = vand.u32 %v436, 4294901760
  %v438 = vsub.f32 %v436, %v437
  %v439 = vand.u32 %v438, 4294901760
  %440 = vmatpush.msra.mxu0 %v439
  %v441 = vand.u32 %v389, 4294901760
  %v442 = vsub.f32 %v389, %v441
  %v443 = vand.u32 %v442, 4294901760
  %v444 = vsub.f32 %v442, %v443
  %v445 = vand.u32 %v444, 4294901760
  %446 = vmatpush.msra.mxu0 %v445
  %v447 = vand.u32 %v388, 4294901760
  %v448 = vsub.f32 %v388, %v447
  %v449 = vand.u32 %v448, 4294901760
  %v450 = vsub.f32 %v448, %v449
  %v451 = vand.u32 %v450, 4294901760
  %452 = vmatpush.msra.mxu0 %v451
  %v453 = vand.u32 %v387, 4294901760
  %v454 = vsub.f32 %v387, %v453
  %v455 = vand.u32 %v454, 4294901760
  %v456 = vsub.f32 %v454, %v455
  %v457 = vand.u32 %v456, 4294901760
  %458 = vmatpush.msra.mxu0 %v457
  %v459 = vand.u32 %v392, 4294901760
  %460 = vmatmul.f32.gmra.mxu0 %v459
  %v461 = vpop.f32.mrf.mxu0
  %v462 = vadd.f32 %v421, %v461
  %463 = vdwg.mxu0
  %464 = vmatpush.msra.mxu0 0.0
  %465 = vmatpush.msra.mxu0 0.0
  %466 = vmatpush.msra.mxu0 0.0
  %467 = vmatpush.msra.mxu0 0.0
  %468 = vmatpush.msra.mxu0 0.0
  %469 = vmatpush.msra.mxu0 0.0
  %470 = vmatpush.msra.mxu0 0.0
  %471 = vmatpush.msra.mxu0 0.0
  %472 = vmatpush.msra.mxu0 0.0
  %473 = vmatpush.msra.mxu0 0.0
  %474 = vmatpush.msra.mxu0 0.0
  %475 = vmatpush.msra.mxu0 0.0
  %v476 = vand.u32 %v390, 4294901760
  %v477 = vsub.f32 %v390, %v476
  %478 = vmatpush.msra.mxu0 %v477
  %v479 = vand.u32 %v389, 4294901760
  %v480 = vsub.f32 %v389, %v479
  %481 = vmatpush.msra.mxu0 %v480
  %v482 = vand.u32 %v388, 4294901760
  %v483 = vsub.f32 %v388, %v482
  %484 = vmatpush.msra.mxu0 %v483
  %v485 = vand.u32 %v387, 4294901760
  %v486 = vsub.f32 %v387, %v485
  %487 = vmatpush.msra.mxu0 %v486
  %v488 = vand.u32 %v392, 4294901760
  %v489 = vsub.f32 %v392, %v488
  %490 = vmatmul.f32.gmra.mxu0 %v489
  %v491 = vpop.f32.mrf.mxu0
  %v492 = vadd.f32 %v462, %v491
  %493 = vdwg.mxu0
  %494 = vmatpush.msra.mxu0 0.0
  %495 = vmatpush.msra.mxu0 0.0
  %496 = vmatpush.msra.mxu0 0.0
  %497 = vmatpush.msra.mxu0 0.0
  %498 = vmatpush.msra.mxu0 0.0
  %499 = vmatpush.msra.mxu0 0.0
  %500 = vmatpush.msra.mxu0 0.0
  %501 = vmatpush.msra.mxu0 0.0
  %502 = vmatpush.msra.mxu0 0.0
  %503 = vmatpush.msra.mxu0 0.0
  %504 = vmatpush.msra.mxu0 0.0
  %505 = vmatpush.msra.mxu0 0.0
  %v506 = vand.u32 %v390, 4294901760
  %507 = vmatpush.msra.mxu0 %v506
  %v508 = vand.u32 %v389, 4294901760
  %509 = vmatpush.msra.mxu0 %v508
  %v510 = vand.u32 %v388, 4294901760
  %511 = vmatpush.msra.mxu0 %v510
  %v512 = vand.u32 %v387, 4294901760
  %513 = vmatpush.msra.mxu0 %v512
  %v514 = vand.u32 %v392, 4294901760
  %v515 = vsub.f32 %v392, %v514
  %v516 = vand.u32 %v515, 4294901760
  %517 = vmatmul.f32.gmra.mxu0 %v516
  %v518 = vpop.f32.mrf.mxu0
  %v519 = vadd.f32 %v492, %v518
  %520 = vdwg.mxu0
  %521 = vmatpush.msra.mxu0 0.0
  %522 = vmatpush.msra.mxu0 0.0
  %523 = vmatpush.msra.mxu0 0.0
  %524 = vmatpush.msra.mxu0 0.0
  %525 = vmatpush.msra.mxu0 0.0
  %526 = vmatpush.msra.mxu0 0.0
  %527 = vmatpush.msra.mxu0 0.0
  %528 = vmatpush.msra.mxu0 0.0
  %529 = vmatpush.msra.mxu0 0.0
  %530 = vmatpush.msra.mxu0 0.0
  %531 = vmatpush.msra.mxu0 0.0
  %532 = vmatpush.msra.mxu0 0.0
  %v533 = vand.u32 %v390, 4294901760
  %v534 = vsub.f32 %v390, %v533
  %v535 = vand.u32 %v534, 4294901760
  %536 = vmatpush.msra.mxu0 %v535
  %v537 = vand.u32 %v389, 4294901760
  %v538 = vsub.f32 %v389, %v537
  %v539 = vand.u32 %v538, 4294901760
  %540 = vmatpush.msra.mxu0 %v539
  %v541 = vand.u32 %v388, 4294901760
  %v542 = vsub.f32 %v388, %v541
  %v543 = vand.u32 %v542, 4294901760
  %544 = vmatpush.msra.mxu0 %v543
  %v545 = vand.u32 %v387, 4294901760
  %v546 = vsub.f32 %v387, %v545
  %v547 = vand.u32 %v546, 4294901760
  %548 = vmatpush.msra.mxu0 %v547
  %v549 = vand.u32 %v392, 4294901760
  %550 = vmatmul.f32.gmra.mxu0 %v549
  %v551 = vpop.f32.mrf.mxu0
  %v552 = vadd.f32 %v519, %v551
  %553 = vdwg.mxu0
  %554 = vmatpush.msra.mxu0 0.0
  %555 = vmatpush.msra.mxu0 0.0
  %556 = vmatpush.msra.mxu0 0.0
  %557 = vmatpush.msra.mxu0 0.0
  %558 = vmatpush.msra.mxu0 0.0
  %559 = vmatpush.msra.mxu0 0.0
  %560 = vmatpush.msra.mxu0 0.0
  %561 = vmatpush.msra.mxu0 0.0
  %562 = vmatpush.msra.mxu0 0.0
  %563 = vmatpush.msra.mxu0 0.0
  %564 = vmatpush.msra.mxu0 0.0
  %565 = vmatpush.msra.mxu0 0.0
  %v566 = vand.u32 %v390, 4294901760
  %567 = vmatpush.msra.mxu0 %v566
  %v568 = vand.u32 %v389, 4294901760
  %569 = vmatpush.msra.mxu0 %v568
  %v570 = vand.u32 %v388, 4294901760
  %571 = vmatpush.msra.mxu0 %v570
  %v572 = vand.u32 %v387, 4294901760
  %573 = vmatpush.msra.mxu0 %v572
  %v574 = vand.u32 %v392, 4294901760
  %575 = vmatmul.f32.gmra.mxu0 %v574
  %v576 = vpop.f32.mrf.mxu0
  %v577 = vadd.f32 %v552, %v576
  %578 = vdwg.mxu0
  %v579 = vld [vmem:[#allocation2] sm:$0x1]
  %v581 = vperm.slane %v579, 0
  %582 = vrot.lane.b32.xlu0 %v581, 8
  %v583 = vpop.permute.xlu0 %582
  %v585 = vadd.f32 %v214, %v583
  %v586 = vsub.f32 %v384, %v577
  %588 = vrot.lane.b32.xlu0 %v586, 8
  %v589 = vpop.permute.xlu0 %588
  %v591 = vadd.f32 %v585, %v589
  %593 = vrot.lane.b32.xlu0 %v591, 120
  %v594 = vpop.permute.xlu0 %593
  %vm596 = vcmask 7168
  %597 = vst.msk [vmem:[%s5] sm:$0xff] %vm596, %v594
  // Predicated region
  $region22: #{fm_forward.1} parent=0 // pred_check
    _
  $region23: #{fm_forward.1} parent=0 // pred_check_branch
    %599 = sbr.rel (0) target = $region25
  $region24: #{fm_forward.1} parent=0 // pred_region
    _
  $region25: #{fm_forward.1} parent=0 // pred_fallthru
    _
  // Predicated region
  $region26: #{fm_forward.1} parent=0 // pred_check
    _
  $region27: #{fm_forward.1} parent=0 // pred_check_branch
    %601 = sbr.rel (0) target = $region29
  $region28: #{fm_forward.1} parent=0 // pred_region
    _
  $region29: #{fm_forward.1} parent=0 // pred_fallthru
    _

</llo_original>
